<compile_context>
chip_gen: v7x
topology: tpu7x:2x2x1
jax: 0.10.0
libtpu: 0.0.40
codegen_flags: <defaults>
</compile_context>

<pallas_src>
import functools

import jax
import jax.numpy as jnp
from jax.experimental import pallas as pl
from jax.experimental.pallas import tpu as pltpu


def _round_up(x: int, m: int) -> int:
    return -(-x // m) * m


def _padded_block_bytes(rows: int, cols: int, itemsize: int) -> int:
    """Real VMEM bytes of one (rows, cols) block after (8, 128) layout padding."""
    return _round_up(max(rows, 1), 8) * _round_up(max(cols, 1), 128) * itemsize


def _vmem_capacity_bytes() -> int:
    try:
        return int(pltpu.get_tpu_info().vmem_capacity_bytes)
    except Exception:
        return 64 << 20  # conservative (v7x-sized) fallback


def _pick_tile(rows: int, cols: int, itemsize: int, cap_bytes: int):
    """Pick (tr, tc): tc a multiple of 128 (or == cols), padded block <= cap_bytes."""
    r_pad = _round_up(rows, 8)
    c_pad = _round_up(cols, 128)
    lanes = (cap_bytes // (r_pad * itemsize)) // 128 * 128
    if lanes >= c_pad:
        return rows, cols                       # whole (rows, cols) fits in one block
    if lanes >= 128:
        return rows, int(lanes)                 # full rows, tiled lanes
    # Too many rows even at 128 lanes: tile rows (multiple of 8) as well.
    tr = (cap_bytes // (128 * itemsize)) // 8 * 8
    tr = int(max(8, min(tr, r_pad)))
    return tr, 128


def _stats_kernel(t_ref, sum_ref, sq_ref, *, thw, hw_total, tr, r_total,
                  hw_per_split, col_mask, row_mask):
    """Accumulate per-row (= per (b, c)) sum / sum-of-squares of target tiles.

    t_ref:   (tr, thw) target tile.
    sum_ref: (tr, 1) output block, resident across the "arbitrary" HW axis.
    sq_ref:  (tr, 1) output block, resident across the "arbitrary" HW axis.
    """
    h = pl.program_id(2)

    @pl.when(h == 0)
    def _():
        sum_ref[...] = jnp.zeros_like(sum_ref)
        sq_ref[...] = jnp.zeros_like(sq_ref)

    t = t_ref[...].astype(jnp.float32)
    if col_mask:  # HW tail tile: zero out-of-range lanes before reducing
        s = pl.program_id(0)
        start = (s * hw_per_split + h) * thw
        cidx = jax.lax.broadcasted_iota(jnp.int32, t.shape, 1)
        t = jnp.where(start + cidx < hw_total, t, 0.0)
    if row_mask:  # row tail tile: zero out-of-range sublanes
        r = pl.program_id(1)
        ridx = jax.lax.broadcasted_iota(jnp.int32, t.shape, 0)
        t = jnp.where(r * tr + ridx < r_total, t, 0.0)

    sum_ref[...] += jnp.sum(t, axis=-1, keepdims=True)
    sq_ref[...] += jnp.sum(t * t, axis=-1, keepdims=True)


def _apply_kernel(inv_ref, p_ref, t_ref, out_ref):
    """out = ((pred - target) * inv_std)^2   (the mean cancels algebraically)."""
    inv = inv_ref[...].astype(jnp.float32)                                   # (tr, 1)
    d = (p_ref[...].astype(jnp.float32) - t_ref[...].astype(jnp.float32)) * inv
    out_ref[...] = (d * d).astype(out_ref.dtype)


def normalized_mse_loss(pred: jax.Array,
                        target: jax.Array,
                        eps: float = 1e-08,
                        reduction: str = "none") -> jax.Array:
    """Pallas implementation of NormalizedMSELoss.forward (NCHW inputs)."""
    assert pred.shape == target.shape and pred.ndim == 4
    B, C, H, W = pred.shape
    HW = H * W
    R = B * C
    N = B * HW
    # TODO(synk): N == 1 yields division by zero (NaN inv_std), same as torch.std(ddof=1).

    itemsize = max(jnp.dtype(pred.dtype).itemsize, jnp.dtype(target.dtype).itemsize)

    # ---- VMEM budgets (generation-gated; real padded footprint, real dtype) ----------
    vmem_cap = _vmem_capacity_bytes()              # 128 MiB v5e/v6e, 64 MiB v7x (per TC)
    scoped_max = (vmem_cap * 3) // 4               # headroom for compiler internals
    apply_cap = min(scoped_max // 8, 8 << 20)      # 3 streams x 2 buffers + slack
    stats_cap = min(scoped_max // 3, 3 * apply_cap)  # stats pass streams only 1 array

    # Free reshapes (no transpose, no extra HBM traffic).
    target2 = target.reshape(R, HW)
    pred2 = pred.reshape(R, HW)

    # ---- Pass 1: per-(b, c) partial sum / sum-of-squares of target --------------------
    tr_s, thw_s = _pick_tile(R, HW, itemsize, stats_cap)
    n_r_s = pl.cdiv(R, tr_s)
    n_hw_s = pl.cdiv(HW, thw_s)
    # Leading "parallel" split axis so v7x can put both TensorCores on the reduction;
    # only split when it divides evenly (v5e/v6e: just two short sequential groups).
    n_split = 2 if (n_hw_s >= 4 and n_hw_s % 2 == 0) else 1
    per_split = n_hw_s // n_split

    stats_blk = _padded_block_bytes(tr_s, thw_s, itemsize)
    acc_blk = _padded_block_bytes(tr_s, 1, 4)
    stats_limit = int(min(scoped_max,
                          max(2 * stats_blk + 4 * acc_blk + (4 << 20), 32 << 20)))

    stats_kernel = functools.partial(
        _stats_kernel, thw=thw_s, hw_total=HW, tr=tr_s, r_total=R,
        hw_per_split=per_split,
        col_mask=(HW % thw_s != 0), row_mask=(R % tr_s != 0))

    psum, psq = pl.pallas_call(
        stats_kernel,
        out_shape=(jax.ShapeDtypeStruct((n_split, R, 1), jnp.float32),
                   jax.ShapeDtypeStruct((n_split, R, 1), jnp.float32)),
        grid=(n_split, n_r_s, per_split),
        in_specs=[
            pl.BlockSpec((tr_s, thw_s), lambda s, r, h: (r, s * per_split + h)),
        ],
        out_specs=[
            pl.BlockSpec((None, tr_s, 1), lambda s, r, h: (s, r, 0)),
            pl.BlockSpec((None, tr_s, 1), lambda s, r, h: (s, r, 0)),
        ],
        compiler_params=pltpu.CompilerParams(
            dimension_semantics=("parallel", "parallel", "arbitrary"),
            vmem_limit_bytes=stats_limit),
    )(target2)

    # ---- Tiny combine + inv_std finalize in plain JAX (O(C) work) ----------------------
    sums = psum[..., 0].reshape(n_split, B, C).sum(axis=(0, 1))   # (C,)
    sqs = psq[..., 0].reshape(n_split, B, C).sum(axis=(0, 1))     # (C,)
    n = jnp.float32(N)
    mean = sums / n
    # TODO(synk): single-pass E[x^2]-E[x]^2 can cancel catastrophically when |mean| >> std;
    # if such data is expected, add a centered second reduction pass.
    var = jnp.maximum((sqs - n * mean * mean) / jnp.float32(N - 1), 0.0)
    inv_std = 1.0 / (jnp.sqrt(var) + jnp.float32(eps))            # (C,)
    inv_std_rows = jnp.tile(inv_std, B).reshape(R, 1)             # row index = b*C + c

    # ---- Pass 2: elementwise normalized squared error ----------------------------------
    tr_a, thw_a = _pick_tile(R, HW, itemsize, apply_cap)
    n_r_a = pl.cdiv(R, tr_a)
    n_hw_a = pl.cdiv(HW, thw_a)

    apply_blk = _padded_block_bytes(tr_a, thw_a, itemsize)
    inv_blk = _padded_block_bytes(tr_a, 1, 4)
    apply_limit = int(min(scoped_max,
                          max(6 * apply_blk + 2 * inv_blk + (4 << 20), 32 << 20)))

    loss2 = pl.pallas_call(
        _apply_kernel,
        out_shape=jax.ShapeDtypeStruct((R, HW), pred.dtype),
        grid=(n_r_a, n_hw_a),
        in_specs=[
            pl.BlockSpec((tr_a, 1), lambda r, h: (r, 0)),
            pl.BlockSpec((tr_a, thw_a), lambda r, h: (r, h)),
            pl.BlockSpec((tr_a, thw_a), lambda r, h: (r, h)),
        ],
        out_specs=pl.BlockSpec((tr_a, thw_a), lambda r, h: (r, h)),
        compiler_params=pltpu.CompilerParams(
            dimension_semantics=("parallel", "parallel"),
            vmem_limit_bytes=apply_limit),
    )(inv_std_rows, pred2, target2)

    loss = loss2.reshape(B, C, H, W)

    if reduction == "mean":
        return jnp.mean(loss)
    elif reduction == "sum":
        return jnp.sum(loss)
    else:  # 'none' (module default)
        return loss


def _reference(pred, target, eps=1e-08):
    """Pure-JAX reference mirroring the PyTorch module (unbiased std)."""
    mean = jnp.mean(target, axis=(0, 2, 3), keepdims=True)
    n = target.shape[0] * target.shape[2] * target.shape[3]
    var = jnp.sum((target - mean) ** 2, axis=(0, 2, 3), keepdims=True) / (n - 1)
    std = jnp.sqrt(var) + eps
    pred_norm = (pred - mean) / std
    target_norm = (target - mean) / std
    return (pred_norm - target_norm) ** 2


if __name__ == "__main__":
    key = jax.random.PRNGKey(0)
    k1, k2 = jax.random.split(key)

    B, C, H, W = 2, 4, 16, 16  # small NCHW shapes
    pred = jax.random.normal(k1, (B, C, H, W), dtype=jnp.float32)
    target = 2.5 * jax.random.normal(k2, (B, C, H, W), dtype=jnp.float32) + 0.7

    out = normalized_mse_loss(pred, target, eps=1e-08, reduction="none")
    out = jax.block_until_ready(out)

    ref = _reference(pred, target, eps=1e-08)
    assert out.shape == (B, C, H, W)
    max_err = float(jnp.max(jnp.abs(out - ref)))
    assert jnp.allclose(out, ref, rtol=1e-4, atol=1e-5), max_err

    print("KERNEL_OK")
</pallas_src>

<mosaic_0001>
module attributes {stable_mosaic.version = 11 : i64} {
  func.func @_stats_kernel(%arg0: i32, %arg1: i32, %arg2: i32, %arg3: memref<8x256xf32, #tpu.memory_space<vmem>>, %arg4: memref<1x8x1xf32, #tpu.memory_space<vmem>>, %arg5: memref<1x8x1xf32, #tpu.memory_space<vmem>>) attributes {dimension_semantics = [#tpu.dimension_semantics<parallel>, #tpu.dimension_semantics<parallel>, #tpu.dimension_semantics<arbitrary>], iteration_bounds = array<i64: 1, 1, 1>, scalar_prefetch = 0 : i64, scratch_operands = 0 : i64, tpu.core_type = #tpu.core_type<tc>, window_params = [{transform_indices = @transform_0, window_bounds = array<i64: 8, 256>}, {transform_indices = @transform_1, window_bounds = array<i64: 1, 8, 1>}, {transform_indices = @transform_2, window_bounds = array<i64: 1, 8, 1>}]} {
    %c0_i32 = arith.constant 0 : i32
    %0 = arith.cmpi eq, %arg2, %c0_i32 : i32
    %1 = arith.extui %0 : i1 to i32
    %c0_i32_0 = arith.constant 0 : i32
    %2 = arith.cmpi ne, %1, %c0_i32_0 : i32
    scf.if %2 {
      %cst_15 = arith.constant 0.000000e+00 : f32
      %21 = vector.broadcast %cst_15 : f32 to vector<8x1xf32>
      %c0_16 = arith.constant 0 : index
      %c0_17 = arith.constant 0 : index
      %c0_18 = arith.constant 0 : index
      %22 = vector.load %arg4[%c0_16, %c0_17, %c0_18] : memref<1x8x1xf32, #tpu.memory_space<vmem>>, vector<1x8x1xf32>
      %23 = vector.shape_cast %22 : vector<1x8x1xf32> to vector<8x1xf32>
      %24 = vector.shape_cast %21 : vector<8x1xf32> to vector<1x8x1xf32>
      tpu.vector_store %arg4[%c0_16, %c0_17, %c0_18], %24 {strides = array<i32>} : memref<1x8x1xf32, #tpu.memory_space<vmem>>, vector<1x8x1xf32>,
      %cst_19 = arith.constant 0.000000e+00 : f32
      %25 = vector.broadcast %cst_19 : f32 to vector<8x1xf32>
      %c0_20 = arith.constant 0 : index
      %c0_21 = arith.constant 0 : index
      %c0_22 = arith.constant 0 : index
      %26 = vector.load %arg5[%c0_20, %c0_21, %c0_22] : memref<1x8x1xf32, #tpu.memory_space<vmem>>, vector<1x8x1xf32>
      %27 = vector.shape_cast %26 : vector<1x8x1xf32> to vector<8x1xf32>
      %28 = vector.shape_cast %25 : vector<8x1xf32> to vector<1x8x1xf32>
      tpu.vector_store %arg5[%c0_20, %c0_21, %c0_22], %28 {strides = array<i32>} : memref<1x8x1xf32, #tpu.memory_space<vmem>>, vector<1x8x1xf32>,
    } else {
    }
    %c0 = arith.constant 0 : index
    %c0_1 = arith.constant 0 : index
    %3 = vector.load %arg3[%c0, %c0_1] : memref<8x256xf32, #tpu.memory_space<vmem>>, vector<8x256xf32>
    %c0_2 = arith.constant 0 : index
    %c0_3 = arith.constant 0 : index
    %c0_4 = arith.constant 0 : index
    %4 = vector.load %arg4[%c0_2, %c0_3, %c0_4] : memref<1x8x1xf32, #tpu.memory_space<vmem>>, vector<1x8x1xf32>
    %5 = vector.shape_cast %4 : vector<1x8x1xf32> to vector<8x1xf32>
    %cst = arith.constant dense<0.000000e+00> : vector<8xf32>
    %6 = vector.multi_reduction <add>, %3, %cst [1] : vector<8x256xf32> to vector<8xf32>
    %7 = vector.shape_cast %6 : vector<8xf32> to vector<8x1xf32>
    %8 = arith.addf %5, %7 : vector<8x1xf32>
    %c0_5 = arith.constant 0 : index
    %c0_6 = arith.constant 0 : index
    %c0_7 = arith.constant 0 : index
    %9 = vector.load %arg4[%c0_5, %c0_6, %c0_7] : memref<1x8x1xf32, #tpu.memory_space<vmem>>, vector<1x8x1xf32>
    %10 = vector.shape_cast %9 : vector<1x8x1xf32> to vector<8x1xf32>
    %11 = vector.shape_cast %8 : vector<8x1xf32> to vector<1x8x1xf32>
    tpu.vector_store %arg4[%c0_5, %c0_6, %c0_7], %11 {strides = array<i32>} : memref<1x8x1xf32, #tpu.memory_space<vmem>>, vector<1x8x1xf32>,
    %c0_8 = arith.constant 0 : index
    %c0_9 = arith.constant 0 : index
    %c0_10 = arith.constant 0 : index
    %12 = vector.load %arg5[%c0_8, %c0_9, %c0_10] : memref<1x8x1xf32, #tpu.memory_space<vmem>>, vector<1x8x1xf32>
    %13 = vector.shape_cast %12 : vector<1x8x1xf32> to vector<8x1xf32>
    %14 = arith.mulf %3, %3 : vector<8x256xf32>
    %cst_11 = arith.constant dense<0.000000e+00> : vector<8xf32>
    %15 = vector.multi_reduction <add>, %14, %cst_11 [1] : vector<8x256xf32> to vector<8xf32>
    %16 = vector.shape_cast %15 : vector<8xf32> to vector<8x1xf32>
    %17 = arith.addf %13, %16 : vector<8x1xf32>
    %c0_12 = arith.constant 0 : index
    %c0_13 = arith.constant 0 : index
    %c0_14 = arith.constant 0 : index
    %18 = vector.load %arg5[%c0_12, %c0_13, %c0_14] : memref<1x8x1xf32, #tpu.memory_space<vmem>>, vector<1x8x1xf32>
    %19 = vector.shape_cast %18 : vector<1x8x1xf32> to vector<8x1xf32>
    %20 = vector.shape_cast %17 : vector<8x1xf32> to vector<1x8x1xf32>
    tpu.vector_store %arg5[%c0_12, %c0_13, %c0_14], %20 {strides = array<i32>} : memref<1x8x1xf32, #tpu.memory_space<vmem>>, vector<1x8x1xf32>,
    return
  }
  func.func @transform_0(%arg0: i32, %arg1: i32, %arg2: i32) -> (i32, i32) {
    %c1_i32 = arith.constant 1 : i32
    %0 = arith.muli %arg0, %c1_i32 : i32
    %1 = arith.addi %0, %arg2 : i32
    %c0_i32 = arith.constant 0 : i32
    return %arg1, %1 : i32, i32
  }
  func.func @transform_1(%arg0: i32, %arg1: i32, %arg2: i32) -> (i32, i32, i32) {
    %c0_i32 = arith.constant 0 : i32
    %c0_i32_0 = arith.constant 0 : i32
    return %arg0, %arg1, %c0_i32 : i32, i32, i32
  }
  func.func @transform_2(%arg0: i32, %arg1: i32, %arg2: i32) -> (i32, i32, i32) {
    %c0_i32 = arith.constant 0 : i32
    %c0_i32_0 = arith.constant 0 : i32
    return %arg0, %arg1, %c0_i32 : i32, i32, i32
  }
}

</mosaic_0001>

<llo_original>
// kernel: tpu_custom_call.1
$region0: #{tpu_custom_call.1}
  #allocation0 [shape = 'u32[]', space=smem, size = 0x4, offset = 0x4, fixed_abs, tag = 'smem constant byte address 0x4 - core index']
  #allocation1 [shape = 'u32[144,128]{1,0:T(1,128)}', space=vmem, size = 0x12000, scoped, tag = 'internal scratch']
  %s0 = inlined_call_operand.hbm [shape: f32[8,256], index: 0, kind: input, shape index: {}]
  %s1 = inlined_call_operand.vmem [shape: f32[1,8,1], index: 1, kind: output, shape index: {0}]
  %s2 = inlined_call_operand.vmem [shape: f32[1,8,1], index: 2, kind: output, shape index: {1}]
  %3 = xla_tuple %s1, %s2
  %s4 = sld [smem:[#allocation0]]
  $region30: #{tpu_custom_call.1} parent=0
    _
  %s6 = ssub.s32 1, %s4
  %s7 = scalar_select 0, %s6, %s4
  $region1: #{tpu_custom_call.1} parent=0
    #allocation2 [shape = 'u8[8192]{0}', space=vmem, size = 0x2000, scoped, tag = 'input window, operand 0, single buffered']
    #allocation3 [shape = 's32[1]{0}', space=sflag, size = 0x4, scoped, tag = 'scoped memory for tpu_custom_call.1']
    %8 = vsyncpa [#allocation3], 0
    // Predicated region
    $region2: #{tpu_custom_call.1} parent=1 // pred_check
      _
    $region3: #{tpu_custom_call.1} parent=1 // pred_check_branch
      %10 = sbr.rel (0) target = $region5
    $region4: #{tpu_custom_call.1} parent=1 // pred_region
      %s11 = sadd.s32 0, 0
      %s12 = smul.u32 2, %s11
      %s14 = ssub.s32 256, 256
      %15 = vsyncadd [#allocation3], %s14
      %s16 = smul.addr %s12, 128
      %s17 = scalar_lea.hbm %s0, %s16
      %s19 = sshll.u32 [#allocation2], 4
      %s20 = int_to_ptr.vmem [resolvable:$true] %s19
      %22 = dma.hbm_to_vmem [thread:$0]  %s17, 256, %s20, [#allocation3]
    $region5: #{tpu_custom_call.1} parent=1 // pred_fallthru
      _
    // Predicated region
    $region6: #{tpu_custom_call.1} parent=1 // pred_check
      _
    $region7: #{tpu_custom_call.1} parent=1 // pred_check_branch
      %24 = sbr.rel (0) target = $region9
    $region8: #{tpu_custom_call.1} parent=1 // pred_region
      %25 = dma.done [#allocation3], 256
    $region9: #{tpu_custom_call.1} parent=1 // pred_fallthru
      _
    %s26 = sadd.s32 0, 0
    %s27 = smul.u32 2, %s26
    %p28 = scmp.eq.s32.totalorder 0, 0
    // Predicated region
    $region10: #{tpu_custom_call.1} parent=1 // pred_check
      %p29 = pneg %p28
    $region11: #{tpu_custom_call.1} parent=1 // pred_check_branch
      %31 = sbr.rel (%p29) target = $region13
    $region12: #{tpu_custom_call.1} parent=1 // pred_region
      %vm32 = vcmask 7168
      %33 = vst.msk [vmem:[%s1] sm:$0xff] %vm32, 0.0
      %34 = vst.msk [vmem:[%s2] sm:$0xff] %vm32, 0.0
    $region13: #{tpu_custom_call.1} parent=1 // pred_fallthru
      _
    %v35 = vld [vmem:[#allocation2] sm:$0xff]
    %v36 = vld [vmem:[#allocation2 + $0x8] sm:$0xff]
    %v37 = vld [vmem:[%s1] sm:$0xff]
    %v38 = vadd.f32 %v35, %v36
    %39 = vadd.xlane.f32.xlu0 %v38
    %v40 = vpop.xlane.xlu0 %39
    %v41 = vadd.f32 %v37, %v40
    %vm42 = vcmask 7168
    %43 = vst.msk [vmem:[%s1] sm:$0xff] %vm42, %v41
    %v44 = vld [vmem:[%s2] sm:$0xff]
    %v45 = vmul.f32 %v35, %v35
    %v46 = vmul.f32 %v36, %v36
    %v47 = vadd.f32 %v45, %v46
    %48 = vadd.xlane.f32.xlu0 %v47
    %v49 = vpop.xlane.xlu0 %48
    %v50 = vadd.f32 %v44, %v49
    %51 = vst.msk [vmem:[%s2] sm:$0xff] %vm42, %v50
    // Predicated region
    $region14: #{tpu_custom_call.1} parent=1 // pred_check
      _
    $region15: #{tpu_custom_call.1} parent=1 // pred_check_branch
      %53 = sbr.rel (0) target = $region17
    $region16: #{tpu_custom_call.1} parent=1 // pred_region
      _
    $region17: #{tpu_custom_call.1} parent=1 // pred_fallthru
      _
    // Predicated region
    $region18: #{tpu_custom_call.1} parent=1 // pred_check
      _
    $region19: #{tpu_custom_call.1} parent=1 // pred_check_branch
      %55 = sbr.rel (0) target = $region21
    $region20: #{tpu_custom_call.1} parent=1 // pred_region
      _
    $region21: #{tpu_custom_call.1} parent=1 // pred_fallthru
      _
    // Predicated region
    $region22: #{tpu_custom_call.1} parent=1 // pred_check
      _
    $region23: #{tpu_custom_call.1} parent=1 // pred_check_branch
      %57 = sbr.rel (0) target = $region25
    $region24: #{tpu_custom_call.1} parent=1 // pred_region
      _
    $region25: #{tpu_custom_call.1} parent=1 // pred_fallthru
      _
    // Predicated region
    $region26: #{tpu_custom_call.1} parent=1 // pred_check
      _
    $region27: #{tpu_custom_call.1} parent=1 // pred_check_branch
      %59 = sbr.rel (0) target = $region29
    $region28: #{tpu_custom_call.1} parent=1 // pred_region
      _
    $region29: #{tpu_custom_call.1} parent=1 // pred_fallthru
      _
    %60 = vsyncpa [#allocation3], 1

</llo_original>
